<compile_context>
chip_gen: v6e
topology: v6e:2x2x1
jax: 0.10.0
libtpu: 0.0.40
codegen_flags: <defaults>
</compile_context>

<pallas_src>
import jax
import jax.numpy as jnp
from jax.experimental import pallas as pl
from jax.experimental.pallas import tpu as pltpu


def _round_up(x, m):
    return ((x + m - 1) // m) * m


def estimator_kernel(x_ref, a_ref,
                     w1_ref, b1_ref,
                     w2h_ref, w2a_ref, b2_ref,
                     w3_ref, b3_ref,
                     o_ref):
    # fc1: (10, D) @ (D, TB) -> (10, TB); bias (10, 1) broadcasts over lanes.
    h1 = jax.nn.sigmoid(
        jnp.dot(w1_ref[...], x_ref[...], preferred_element_type=jnp.float32)
        + b1_ref[...]
    )
    # fc2 on concat([h1, action]); action column of W2 handled as a VPU
    # outer product (5,1)*(1,TB) instead of a wasteful K=1 MXU matmul.
    z2 = (jnp.dot(w2h_ref[...], h1, preferred_element_type=jnp.float32)
          + w2a_ref[...] * a_ref[...]
          + b2_ref[...])
    h2 = jax.nn.sigmoid(z2)
    # fc3: (1, 5) @ (5, TB) + b3 -> lane-dense (1, TB) output block.
    o_ref[...] = (jnp.dot(w3_ref[...], h2, preferred_element_type=jnp.float32)
                  + b3_ref[...])


def estimator_forward(classifier_input, action_input, params, *, max_tile=1024):
    """classifier_input: (B, D) f32; action_input: (B, 1) f32 -> (B, 1) f32."""
    B, D = classifier_input.shape
    w1, b1, w2, b2, w3, b3 = (params["w1"], params["b1"], params["w2"],
                              params["b2"], params["w3"], params["b3"])

    # Batch tile: multiple of 128 lanes, capped so double-buffered input tiles
    # stay well inside even v7x's 64 MiB physical VMEM.
    TB = min(max_tile, _round_up(B, 128))
    B_pad = _round_up(B, TB)
    n_tiles = B_pad // TB

    # Transpose once in the wrapper (layout plumbing) and pad the batch (lane) axis.
    x_t = jnp.pad(classifier_input.T, ((0, 0), (0, B_pad - B)))   # (D, B_pad)
    a_t = jnp.pad(action_input.T, ((0, 0), (0, B_pad - B)))       # (1, B_pad)

    # Transposed / column-shaped weights & biases (tiny, stay VMEM-resident).
    w1_t = w1.T                      # (10, D)
    w2h_t = w2[:10, :].T             # (5, 10)   acts on h1
    w2a_c = w2[10:, :].T             # (5, 1)    acts on action (outer product)
    w3_t = w3.T                      # (1, 5)
    b1_c = b1.reshape(-1, 1)         # (10, 1)
    b2_c = b2.reshape(-1, 1)         # (5, 1)
    b3_c = b3.reshape(-1, 1)         # (1, 1)

    def tile_spec(rows):             # batch-tiled operands
        return pl.BlockSpec((rows, TB), lambda i: (0, i))

    def resident_spec(arr):          # weights/biases resident across the grid
        return pl.BlockSpec(arr.shape, lambda i: (0, 0))

    weight_bytes = 4 * (w1_t.size + b1_c.size + w2h_t.size + w2a_c.size
                        + b2_c.size + w3_t.size + b3_c.size)
    cost = pl.CostEstimate(
        flops=int(2 * B_pad * (D * 10 + 10 * 5 + 5)),
        transcendentals=int(15 * B_pad),
        bytes_accessed=int(4 * B_pad * (D + 1 + 1) + weight_bytes),
    )

    out_t = pl.pallas_call(
        estimator_kernel,
        out_shape=jax.ShapeDtypeStruct((1, B_pad), jnp.float32),
        grid=(n_tiles,),
        in_specs=[
            tile_spec(D),            # x_t   (D, TB) per step
            tile_spec(1),            # a_t   (1, TB) per step
            resident_spec(w1_t),
            resident_spec(b1_c),
            resident_spec(w2h_t),
            resident_spec(w2a_c),
            resident_spec(b2_c),
            resident_spec(w3_t),
            resident_spec(b3_c),
        ],
        out_specs=pl.BlockSpec((1, TB), lambda i: (0, i)),
        compiler_params=pltpu.CompilerParams(
            dimension_semantics=("parallel",),
            vmem_limit_bytes=32 * 1024 * 1024,
        ),
        cost_estimate=cost,
    )(x_t, a_t, w1_t, b1_c, w2h_t, w2a_c, b2_c, w3_t, b3_c)

    # Back to the module's (B, 1) layout; drop lane padding.
    return out_t[:, :B].T


def init_params(key, classifier_state_length, bias_average):
    """Deterministic init mimicking nn.Linear default (uniform +-1/sqrt(fan_in)),
    with fc3 bias set to `bias_average` (as in the PyTorch __init__)."""
    k1, k2, k3, _, _ = jax.random.split(key, 5)
    D = classifier_state_length

    def lin(k, fan_in, fan_out):
        bound = 1.0 / jnp.sqrt(jnp.float32(fan_in))
        kw, kb = jax.random.split(k)
        w = jax.random.uniform(kw, (fan_in, fan_out), jnp.float32, -bound, bound)
        b = jax.random.uniform(kb, (fan_out,), jnp.float32, -bound, bound)
        return w, b

    w1, b1 = lin(k1, D, 10)
    w2, b2 = lin(k2, 11, 5)
    w3, _ = lin(k3, 5, 1)
    b3 = jnp.full((1,), bias_average, dtype=jnp.float32)
    return {"w1": w1, "b1": b1, "w2": w2, "b2": b2, "w3": w3, "b3": b3}


def reference_forward(classifier_input, action_input, params):
    """Pure-JAX reference matching the PyTorch forward exactly."""
    h1 = jax.nn.sigmoid(classifier_input @ params["w1"] + params["b1"])
    z = jnp.concatenate([h1, action_input], axis=1)
    h2 = jax.nn.sigmoid(z @ params["w2"] + params["b2"])
    return h2 @ params["w3"] + params["b3"]


if __name__ == "__main__":
    key = jax.random.PRNGKey(0)
    B = 8                       # batch
    D = 32                      # classifier_state_length
    bias_average = 0.5

    kp, kx, ka = jax.random.split(key, 3)
    params = init_params(kp, D, bias_average)
    classifier_input = jax.random.normal(kx, (B, D), jnp.float32)
    action_input = jax.random.uniform(ka, (B, 1), jnp.float32)

    out = estimator_forward(classifier_input, action_input, params)
    out = jax.block_until_ready(out)

    ref = reference_forward(classifier_input, action_input, params)
    assert out.shape == (B, 1), out.shape
    assert jnp.allclose(out, ref, atol=1e-5, rtol=1e-5), (out, ref)

    print("KERNEL_OK")
</pallas_src>

<mosaic_0001>
module attributes {stable_mosaic.version = 11 : i64} {
  func.func @estimator_kernel(%arg0: i32, %arg1: memref<32x128xf32, #tpu.memory_space<vmem>>, %arg2: memref<1x128xf32, #tpu.memory_space<vmem>>, %arg3: memref<10x32xf32, #tpu.memory_space<vmem>>, %arg4: memref<10x1xf32, #tpu.memory_space<vmem>>, %arg5: memref<5x10xf32, #tpu.memory_space<vmem>>, %arg6: memref<5x1xf32, #tpu.memory_space<vmem>>, %arg7: memref<5x1xf32, #tpu.memory_space<vmem>>, %arg8: memref<1x5xf32, #tpu.memory_space<vmem>>, %arg9: memref<1x1xf32, #tpu.memory_space<vmem>>, %arg10: memref<1x128xf32, #tpu.memory_space<vmem>>) attributes {dimension_semantics = [#tpu.dimension_semantics<parallel>], iteration_bounds = array<i64: 1>, scalar_prefetch = 0 : i64, scratch_operands = 0 : i64, tpu.core_type = #tpu.core_type<tc>, window_params = [{transform_indices = @transform_0, window_bounds = array<i64: 32, 128>}, {transform_indices = @transform_1, window_bounds = array<i64: 1, 128>}, {pipeline_mode = #tpu.pipeline_mode<synchronous>, transform_indices = @transform_2, window_bounds = array<i64: 10, 32>}, {pipeline_mode = #tpu.pipeline_mode<synchronous>, transform_indices = @transform_3, window_bounds = array<i64: 10, 1>}, {pipeline_mode = #tpu.pipeline_mode<synchronous>, transform_indices = @transform_4, window_bounds = array<i64: 5, 10>}, {pipeline_mode = #tpu.pipeline_mode<synchronous>, transform_indices = @transform_5, window_bounds = array<i64: 5, 1>}, {pipeline_mode = #tpu.pipeline_mode<synchronous>, transform_indices = @transform_6, window_bounds = array<i64: 5, 1>}, {pipeline_mode = #tpu.pipeline_mode<synchronous>, transform_indices = @transform_7, window_bounds = array<i64: 1, 5>}, {pipeline_mode = #tpu.pipeline_mode<synchronous>, transform_indices = @transform_8, window_bounds = array<i64: 1, 1>}, {transform_indices = @transform_9, window_bounds = array<i64: 1, 128>}]} {
    %c0 = arith.constant 0 : index
    %c0_0 = arith.constant 0 : index
    %0 = vector.load %arg3[%c0, %c0_0] : memref<10x32xf32, #tpu.memory_space<vmem>>, vector<10x32xf32>
    %c0_1 = arith.constant 0 : index
    %c0_2 = arith.constant 0 : index
    %1 = vector.load %arg1[%c0_1, %c0_2] : memref<32x128xf32, #tpu.memory_space<vmem>>, vector<32x128xf32>
    %cst = arith.constant dense<0.000000e+00> : vector<10x128xf32>
    %2 = tpu.matmul %0, %1, %cst {dimension_numbers = #tpu.dot_dimension_numbers<[1], [0], [0], [1], [0, 0, 1, 1], [], []>} : vector<10x32xf32>, vector<32x128xf32>, vector<10x128xf32> -> vector<10x128xf32>
    %c0_3 = arith.constant 0 : index
    %c0_4 = arith.constant 0 : index
    %3 = vector.load %arg4[%c0_3, %c0_4] : memref<10x1xf32, #tpu.memory_space<vmem>>, vector<10x1xf32>
    %4 = vector.broadcast %3 : vector<10x1xf32> to vector<10x128xf32>
    %5 = arith.addf %2, %4 : vector<10x128xf32>
    %6 = arith.negf %5 : vector<10x128xf32>
    %7 = math.exp %6 : vector<10x128xf32>
    %cst_5 = arith.constant 1.000000e+00 : f32
    %8 = vector.broadcast %cst_5 : f32 to vector<10x128xf32>
    %9 = arith.addf %8, %7 : vector<10x128xf32>
    %10 = arith.divf %8, %9 : vector<10x128xf32>
    %c0_6 = arith.constant 0 : index
    %c0_7 = arith.constant 0 : index
    %11 = vector.load %arg5[%c0_6, %c0_7] : memref<5x10xf32, #tpu.memory_space<vmem>>, vector<5x10xf32>
    %cst_8 = arith.constant dense<0.000000e+00> : vector<5x128xf32>
    %12 = tpu.matmul %11, %10, %cst_8 {dimension_numbers = #tpu.dot_dimension_numbers<[1], [0], [0], [1], [0, 0, 1, 1], [], []>} : vector<5x10xf32>, vector<10x128xf32>, vector<5x128xf32> -> vector<5x128xf32>
    %c0_9 = arith.constant 0 : index
    %c0_10 = arith.constant 0 : index
    %13 = vector.load %arg6[%c0_9, %c0_10] : memref<5x1xf32, #tpu.memory_space<vmem>>, vector<5x1xf32>
    %c0_11 = arith.constant 0 : index
    %c0_12 = arith.constant 0 : index
    %14 = vector.load %arg2[%c0_11, %c0_12] : memref<1x128xf32, #tpu.memory_space<vmem>>, vector<1x128xf32>
    %15 = vector.broadcast %13 : vector<5x1xf32> to vector<5x128xf32>
    %16 = vector.broadcast %14 : vector<1x128xf32> to vector<5x128xf32>
    %17 = arith.mulf %15, %16 : vector<5x128xf32>
    %18 = arith.addf %12, %17 : vector<5x128xf32>
    %c0_13 = arith.constant 0 : index
    %c0_14 = arith.constant 0 : index
    %19 = vector.load %arg7[%c0_13, %c0_14] : memref<5x1xf32, #tpu.memory_space<vmem>>, vector<5x1xf32>
    %20 = vector.broadcast %19 : vector<5x1xf32> to vector<5x128xf32>
    %21 = arith.addf %18, %20 : vector<5x128xf32>
    %22 = arith.negf %21 : vector<5x128xf32>
    %23 = math.exp %22 : vector<5x128xf32>
    %cst_15 = arith.constant 1.000000e+00 : f32
    %24 = vector.broadcast %cst_15 : f32 to vector<5x128xf32>
    %25 = arith.addf %24, %23 : vector<5x128xf32>
    %26 = arith.divf %24, %25 : vector<5x128xf32>
    %c0_16 = arith.constant 0 : index
    %c0_17 = arith.constant 0 : index
    %27 = vector.load %arg8[%c0_16, %c0_17] : memref<1x5xf32, #tpu.memory_space<vmem>>, vector<1x5xf32>
    %cst_18 = arith.constant dense<0.000000e+00> : vector<1x128xf32>
    %28 = tpu.matmul %27, %26, %cst_18 {dimension_numbers = #tpu.dot_dimension_numbers<[1], [0], [0], [1], [0, 0, 1, 1], [], []>} : vector<1x5xf32>, vector<5x128xf32>, vector<1x128xf32> -> vector<1x128xf32>
    %c0_19 = arith.constant 0 : index
    %c0_20 = arith.constant 0 : index
    %29 = vector.load %arg9[%c0_19, %c0_20] : memref<1x1xf32, #tpu.memory_space<vmem>>, vector<1x1xf32>
    %30 = vector.broadcast %29 : vector<1x1xf32> to vector<1x128xf32>
    %31 = arith.addf %28, %30 : vector<1x128xf32>
    %c0_21 = arith.constant 0 : index
    %c0_22 = arith.constant 0 : index
    %32 = vector.load %arg10[%c0_21, %c0_22] : memref<1x128xf32, #tpu.memory_space<vmem>>, vector<1x128xf32>
    tpu.vector_store %arg10[%c0_21, %c0_22], %31 {strides = array<i32>} : memref<1x128xf32, #tpu.memory_space<vmem>>, vector<1x128xf32>,
    return
  }
  func.func @transform_0(%arg0: i32) -> (i32, i32) {
    %c0_i32 = arith.constant 0 : i32
    %c0_i32_0 = arith.constant 0 : i32
    return %c0_i32, %arg0 : i32, i32
  }
  func.func @transform_1(%arg0: i32) -> (i32, i32) {
    %c0_i32 = arith.constant 0 : i32
    %c0_i32_0 = arith.constant 0 : i32
    return %c0_i32, %arg0 : i32, i32
  }
  func.func @transform_2(%arg0: i32) -> (i32, i32) {
    %c0_i32 = arith.constant 0 : i32
    %c0_i32_0 = arith.constant 0 : i32
    %c0_i32_1 = arith.constant 0 : i32
    return %c0_i32, %c0_i32_0 : i32, i32
  }
  func.func @transform_3(%arg0: i32) -> (i32, i32) {
    %c0_i32 = arith.constant 0 : i32
    %c0_i32_0 = arith.constant 0 : i32
    %c0_i32_1 = arith.constant 0 : i32
    return %c0_i32, %c0_i32_0 : i32, i32
  }
  func.func @transform_4(%arg0: i32) -> (i32, i32) {
    %c0_i32 = arith.constant 0 : i32
    %c0_i32_0 = arith.constant 0 : i32
    %c0_i32_1 = arith.constant 0 : i32
    return %c0_i32, %c0_i32_0 : i32, i32
  }
  func.func @transform_5(%arg0: i32) -> (i32, i32) {
    %c0_i32 = arith.constant 0 : i32
    %c0_i32_0 = arith.constant 0 : i32
    %c0_i32_1 = arith.constant 0 : i32
    return %c0_i32, %c0_i32_0 : i32, i32
  }
  func.func @transform_6(%arg0: i32) -> (i32, i32) {
    %c0_i32 = arith.constant 0 : i32
    %c0_i32_0 = arith.constant 0 : i32
    %c0_i32_1 = arith.constant 0 : i32
    return %c0_i32, %c0_i32_0 : i32, i32
  }
  func.func @transform_7(%arg0: i32) -> (i32, i32) {
    %c0_i32 = arith.constant 0 : i32
    %c0_i32_0 = arith.constant 0 : i32
    %c0_i32_1 = arith.constant 0 : i32
    return %c0_i32, %c0_i32_0 : i32, i32
  }
  func.func @transform_8(%arg0: i32) -> (i32, i32) {
    %c0_i32 = arith.constant 0 : i32
    %c0_i32_0 = arith.constant 0 : i32
    %c0_i32_1 = arith.constant 0 : i32
    return %c0_i32, %c0_i32_0 : i32, i32
  }
  func.func @transform_9(%arg0: i32) -> (i32, i32) {
    %c0_i32 = arith.constant 0 : i32
    %c0_i32_0 = arith.constant 0 : i32
    return %c0_i32, %arg0 : i32, i32
  }
}

</mosaic_0001>

<llo_original>
// kernel: tpu_custom_call.1
$region0: #{tpu_custom_call.1}
  #allocation0 [shape = 'u32[]', space=smem, size = 0x4, offset = 0x4, fixed_abs, tag = 'smem constant byte address 0x4 - core index']
  #allocation1 [shape = 'u32[144,128]{1,0:T(1,128)}', space=vmem, size = 0x12000, scoped, tag = 'internal scratch']
  #allocation2 [shape = 'f32[1,1]{1,0:T(1,128)S(1)}', space=vmem, size = 0x200, scoped, tag = 'scoped memory for tpu_custom_call.1']
  %s0 = inlined_call_operand.vmem [shape: f32[32,128], index: 0, kind: input, shape index: {}]
  %s1 = inlined_call_operand.hbm [shape: f32[1,128], index: 1, kind: input, shape index: {}]
  %s2 = inlined_call_operand.hbm [shape: f32[10,32], index: 2, kind: input, shape index: {}]
  %s3 = inlined_call_operand.vmem [shape: f32[10,1], index: 3, kind: input, shape index: {}]
  %s4 = inlined_call_operand.vmem [shape: f32[5,10], index: 4, kind: input, shape index: {}]
  %s5 = inlined_call_operand.vmem [shape: f32[5,1], index: 5, kind: input, shape index: {}]
  %s6 = inlined_call_operand.vmem [shape: f32[5,1], index: 6, kind: input, shape index: {}]
  %s7 = inlined_call_operand.vmem [shape: f32[1,5], index: 7, kind: input, shape index: {}]
  %s8 = inlined_call_operand.<no memory space> [shape: f32[1,1], index: 8, kind: input, shape index: {}]
  %s9 = inlined_call_operand.hbm [shape: f32[1,128], index: 9, kind: output, shape index: {}]
  %s10 = sld [smem:[#allocation0]]
  $region54: #{tpu_custom_call.1} parent=0
    _
  %s12 = ssub.s32 1, %s10
  %s13 = scalar_select 0, %s12, %s10
  %v14 = vstv %s8
  %15 = vst [vmem:[#allocation2] sm:$0x1] %v14
  $region1: #{tpu_custom_call.1} parent=0
    #allocation3 [shape = 'u8[512]{0}', space=vmem, size = 0x400, scoped, tag = 'input window, operand 1, single buffered']
    #allocation4 [shape = 's32[1]{0}', space=sflag, size = 0x4, scoped, tag = 'scoped memory for tpu_custom_call.1']
    #allocation5 [shape = 's32[1]{0}', space=sflag, size = 0x4, scoped, tag = 'scoped memory for tpu_custom_call.1']
    #allocation6 [shape = 'u8[8192]{0}', space=vmem, size = 0x2000, scoped, tag = 'input window, operand 2, single buffered']
    #allocation7 [shape = 's32[1]{0}', space=sflag, size = 0x4, scoped, tag = 'scoped memory for tpu_custom_call.1']
    #allocation8 [shape = 'u8[512]{0}', space=vmem, size = 0x400, scoped, tag = 'output window, operand 0, single buffered']
    %16 = vsyncpa [#allocation4], 0
    %17 = vsyncpa [#allocation7], 0
    %18 = vsyncpa [#allocation5], 0
    // Predicated region
    $region2: #{tpu_custom_call.1} parent=1 // pred_check
      _
    $region3: #{tpu_custom_call.1} parent=1 // pred_check_branch
      %20 = sbr.rel (0) target = $region5
    $region4: #{tpu_custom_call.1} parent=1 // pred_region
      _
    $region5: #{tpu_custom_call.1} parent=1 // pred_fallthru
      _
    // Predicated region
    $region6: #{tpu_custom_call.1} parent=1 // pred_check
      _
    $region7: #{tpu_custom_call.1} parent=1 // pred_check_branch
      %22 = sbr.rel (0) target = $region9
    $region8: #{tpu_custom_call.1} parent=1 // pred_region
      %s24 = ssub.s32 16, 16
      %25 = vsyncadd [#allocation4], %s24
      %s27 = sshll.u32 [#allocation3], 4
      %s28 = int_to_ptr.vmem [resolvable:$true] %s27
      %30 = dma.hbm_to_vmem [thread:$0]  %s1, 16, %s28, [#allocation4]
    $region9: #{tpu_custom_call.1} parent=1 // pred_fallthru
      _
    // Predicated region
    $region10: #{tpu_custom_call.1} parent=1 // pred_check
      _
    $region11: #{tpu_custom_call.1} parent=1 // pred_check_branch
      %32 = sbr.rel (0) target = $region13
    $region12: #{tpu_custom_call.1} parent=1 // pred_region
      %s34 = ssub.s32 256, 256
      %35 = vsyncadd [#allocation7], %s34
      %s36 = sshll.u32 [#allocation6], 4
      %s37 = int_to_ptr.vmem [resolvable:$true] %s36
      %42 = dma.hbm_to_vmem [thread:$0]  %s2, 256, %s37, [#allocation7], 128, 128, 8
    $region13: #{tpu_custom_call.1} parent=1 // pred_fallthru
      _
    // Predicated region
    $region14: #{tpu_custom_call.1} parent=1 // pred_check
      _
    $region15: #{tpu_custom_call.1} parent=1 // pred_check_branch
      %44 = sbr.rel (0) target = $region17
    $region16: #{tpu_custom_call.1} parent=1 // pred_region
      _
    $region17: #{tpu_custom_call.1} parent=1 // pred_fallthru
      _
    // Predicated region
    $region18: #{tpu_custom_call.1} parent=1 // pred_check
      _
    $region19: #{tpu_custom_call.1} parent=1 // pred_check_branch
      %46 = sbr.rel (0) target = $region21
    $region20: #{tpu_custom_call.1} parent=1 // pred_region
      _
    $region21: #{tpu_custom_call.1} parent=1 // pred_fallthru
      _
    // Predicated region
    $region22: #{tpu_custom_call.1} parent=1 // pred_check
      _
    $region23: #{tpu_custom_call.1} parent=1 // pred_check_branch
      %48 = sbr.rel (0) target = $region25
    $region24: #{tpu_custom_call.1} parent=1 // pred_region
      _
    $region25: #{tpu_custom_call.1} parent=1 // pred_fallthru
      _
    // Predicated region
    $region26: #{tpu_custom_call.1} parent=1 // pred_check
      _
    $region27: #{tpu_custom_call.1} parent=1 // pred_check_branch
      %50 = sbr.rel (0) target = $region29
    $region28: #{tpu_custom_call.1} parent=1 // pred_region
      _
    $region29: #{tpu_custom_call.1} parent=1 // pred_fallthru
      _
    // Predicated region
    $region30: #{tpu_custom_call.1} parent=1 // pred_check
      _
    $region31: #{tpu_custom_call.1} parent=1 // pred_check_branch
      %52 = sbr.rel (0) target = $region33
    $region32: #{tpu_custom_call.1} parent=1 // pred_region
      _
    $region33: #{tpu_custom_call.1} parent=1 // pred_fallthru
      _
    // Predicated region
    $region34: #{tpu_custom_call.1} parent=1 // pred_check
      _
    $region35: #{tpu_custom_call.1} parent=1 // pred_check_branch
      %54 = sbr.rel (0) target = $region37
    $region36: #{tpu_custom_call.1} parent=1 // pred_region
      _
    $region37: #{tpu_custom_call.1} parent=1 // pred_fallthru
      _
    // Predicated region
    $region38: #{tpu_custom_call.1} parent=1 // pred_check
      _
    $region39: #{tpu_custom_call.1} parent=1 // pred_check_branch
      %56 = sbr.rel (0) target = $region41
    $region40: #{tpu_custom_call.1} parent=1 // pred_region
      %57 = dma.done [#allocation4], 16
    $region41: #{tpu_custom_call.1} parent=1 // pred_fallthru
      _
    // Predicated region
    $region42: #{tpu_custom_call.1} parent=1 // pred_check
      _
    $region43: #{tpu_custom_call.1} parent=1 // pred_check_branch
      %59 = sbr.rel (0) target = $region45
    $region44: #{tpu_custom_call.1} parent=1 // pred_region
      %60 = dma.done [#allocation7], 256
    $region45: #{tpu_custom_call.1} parent=1 // pred_fallthru
      _
    %v61 = vld [vmem:[#allocation6] sm:$0xff]
    %v62 = vld [vmem:[#allocation6 + $0x8] sm:$0x3]
    %v63 = vld [vmem:[%s0] sm:$0xff]
    %v64 = vld [vmem:[%s0 + $0x8] sm:$0xff]
    %v65 = vld [vmem:[%s0 + $0x10] sm:$0xff]
    %v66 = vld [vmem:[%s0 + $0x18] sm:$0xff]
    %v67 = vld [vmem:[%s3] sm:$0xff]
    %v68 = vld [vmem:[%s3 + $0x8] sm:$0x3]
    %70 = vset.pattern.permute.xlu0 0
    %71 = vperm.xlu0 %70, %v67
    %v72 = vpop.permute.xlu0 %71
    %75 = vset.pattern.permute.xlu0 0
    %76 = vperm.xlu0 %75, %v68
    %v77 = vpop.permute.xlu0 %76
    %vm79 = vcmask 261120
    %v81 = vsel %vm79, %v61, 0
    %v84 = vsel %vm79, %v62, 0
    %86 = vmatprep.subr.mxu0 0.0
    %87 = vmatpush1.msra.mxu0 0.0
    %88 = vmatprep.subr.mxu0 0.0
    %89 = vmatpush1.msra.mxu0 0.0
    %90 = vmatprep.subr.mxu0 0.0
    %91 = vmatpush1.msra.mxu0 0.0
    %92 = vmatprep.subr.mxu0 0.0
    %93 = vmatpush1.msra.mxu0 0.0
    %94 = vmatprep.subr.mxu0 0.0
    %95 = vmatpush1.msra.mxu0 0.0
    %96 = vmatprep.subr.mxu0 0.0
    %97 = vmatpush1.msra.mxu0 0.0
    %98 = vmatprep.subr.mxu0 0.0
    %99 = vmatpush1.msra.mxu0 0.0
    %100 = vmatprep.subr.mxu0 0.0
    %101 = vmatpush1.msra.mxu0 0.0
    %102 = vmatprep.subr.mxu0 0.0
    %103 = vmatpush1.msra.mxu0 0.0
    %104 = vmatprep.subr.mxu0 0.0
    %105 = vmatpush1.msra.mxu0 0.0
    %106 = vmatprep.subr.mxu0 0.0
    %107 = vmatpush1.msra.mxu0 0.0
    %108 = vmatprep.subr.mxu0 0.0
    %109 = vmatpush1.msra.mxu0 0.0
    %110 = vmatprep.subr.mxu0 0.0
    %111 = vmatpush1.msra.mxu0 %v66
    %112 = vmatprep.subr.mxu0 0.0
    %113 = vmatpush1.msra.mxu0 %v65
    %114 = vmatprep.subr.mxu0 0.0
    %115 = vmatpush1.msra.mxu0 %v64
    %116 = vmatprep.subr.mxu0 0.0
    %117 = vmatpush1.msra.mxu0 %v63
    %118 = vmatprep.subr.mxu0 0.0
    %119 = vmatpush2.msra.mxu0 0.0
    %120 = vmatprep.subr.mxu0 0.0
    %121 = vmatpush2.msra.mxu0 0.0
    %122 = vmatprep.subr.mxu0 0.0
    %123 = vmatpush2.msra.mxu0 0.0
    %124 = vmatprep.subr.mxu0 0.0
    %125 = vmatpush2.msra.mxu0 0.0
    %126 = vmatprep.subr.mxu0 0.0
    %127 = vmatpush2.msra.mxu0 0.0
    %128 = vmatprep.subr.mxu0 0.0
    %129 = vmatpush2.msra.mxu0 0.0
    %130 = vmatprep.subr.mxu0 0.0
    %131 = vmatpush2.msra.mxu0 0.0
    %132 = vmatprep.subr.mxu0 0.0
    %133 = vmatpush2.msra.mxu0 0.0
    %134 = vmatprep.subr.mxu0 0.0
    %135 = vmatpush2.msra.mxu0 0.0
    %136 = vmatprep.subr.mxu0 0.0
    %137 = vmatpush2.msra.mxu0 0.0
    %138 = vmatprep.subr.mxu0 0.0
    %139 = vmatpush2.msra.mxu0 0.0
    %140 = vmatprep.subr.mxu0 0.0
    %141 = vmatpush2.msra.mxu0 0.0
    %142 = vmatprep.subr.mxu0 0.0
    %143 = vmatpush2.msra.mxu0 0.0
    %144 = vmatprep.subr.mxu0 0.0
    %145 = vmatpush2.msra.mxu0 0.0
    %146 = vmatprep.subr.mxu0 0.0
    %147 = vmatpush2.msra.mxu0 0.0
    %148 = vmatprep.subr.mxu0 0.0
    %149 = vmatpush2.msra.mxu0 0.0
    %150 = vmatprep.mubr.f32.mxu0 0.0
    %151 = vmatmul.mubr.f32.gmra.mxu0 %v81
    %v152 = vpop.f32.mrf.mxu0
    %v153 = vadd.f32 %v72, %v152
    %v154 = vpop.f32.mrf.mxu0
    %155 = vmatprep.mubr.f32.mxu0 0.0
    %156 = vmatmul.mubr.f32.gmra.mxu0 %v84
    %v157 = vpop.f32.mrf.mxu0
    %v158 = vadd.f32 %v77, %v157
    %v159 = vpop.f32.mrf.mxu0
    %160 = vdwg.mxu0
    %v161 = vxor.u32 %v153, 2147483648
    %v162 = vxor.u32 %v158, 2147483648
    %v163 = vmul.f32 %v161, 1.442695
    %v164 = vpow.pop %v163
    %v165 = vmul.f32 %v162, 1.442695
    %v166 = vpow.pop %v165
    %v167 = vadd.f32 %v164, 1.0
    %v168 = vadd.f32 %v166, 1.0
    %v169 = vrcp.pop %v167
    %v170 = vmul.f32 1.0, %v169
    %v171 = vrcp.pop %v168
    %v172 = vmul.f32 1.0, %v171
    %v173 = vld [vmem:[%s4] sm:$0x1f]
    %v174 = vld [vmem:[%s5] sm:$0x1f]
    %v175 = vld [vmem:[#allocation3] sm:$0x1]
    %177 = vset.pattern.permute.xlu0 0
    %178 = vperm.xlu0 %177, %v174
    %v179 = vpop.permute.xlu0 %178
    %v182 = vlaneseq
    %v183 = vshrl.u32 %v182, 7
    %v184 = vsub.s32 0, %v183
    %v185 = vrot.slane %v175, %v184
    %v187 = vmul.f32 %v179, %v185
    %vm188 = vcmask 80896
    %v190 = vsel %vm188, %v173, 0
    %vm192 = vcmask 1041408
    %v194 = vsel %vm192, %v172, 0
    %196 = vmatprep.subr.mxu0 0.0
    %197 = vmatpush1.msra.mxu0 0.0
    %198 = vmatprep.subr.mxu0 0.0
    %199 = vmatpush1.msra.mxu0 0.0
    %200 = vmatprep.subr.mxu0 0.0
    %201 = vmatpush1.msra.mxu0 0.0
    %202 = vmatprep.subr.mxu0 0.0
    %203 = vmatpush1.msra.mxu0 0.0
    %204 = vmatprep.subr.mxu0 0.0
    %205 = vmatpush1.msra.mxu0 0.0
    %206 = vmatprep.subr.mxu0 0.0
    %207 = vmatpush1.msra.mxu0 0.0
    %208 = vmatprep.subr.mxu0 0.0
    %209 = vmatpush1.msra.mxu0 0.0
    %210 = vmatprep.subr.mxu0 0.0
    %211 = vmatpush1.msra.mxu0 0.0
    %212 = vmatprep.subr.mxu0 0.0
    %213 = vmatpush1.msra.mxu0 0.0
    %214 = vmatprep.subr.mxu0 0.0
    %215 = vmatpush1.msra.mxu0 0.0
    %216 = vmatprep.subr.mxu0 0.0
    %217 = vmatpush1.msra.mxu0 0.0
    %218 = vmatprep.subr.mxu0 0.0
    %219 = vmatpush1.msra.mxu0 0.0
    %220 = vmatprep.subr.mxu0 0.0
    %221 = vmatpush1.msra.mxu0 0.0
    %222 = vmatprep.subr.mxu0 0.0
    %223 = vmatpush1.msra.mxu0 0.0
    %224 = vmatprep.subr.mxu0 0.0
    %225 = vmatpush1.msra.mxu0 %v194
    %226 = vmatprep.subr.mxu0 0.0
    %227 = vmatpush1.msra.mxu0 %v170
    %228 = vmatprep.subr.mxu0 0.0
    %229 = vmatpush2.msra.mxu0 0.0
    %230 = vmatprep.subr.mxu0 0.0
    %231 = vmatpush2.msra.mxu0 0.0
    %232 = vmatprep.subr.mxu0 0.0
    %233 = vmatpush2.msra.mxu0 0.0
    %234 = vmatprep.subr.mxu0 0.0
    %235 = vmatpush2.msra.mxu0 0.0
    %236 = vmatprep.subr.mxu0 0.0
    %237 = vmatpush2.msra.mxu0 0.0
    %238 = vmatprep.subr.mxu0 0.0
    %239 = vmatpush2.msra.mxu0 0.0
    %240 = vmatprep.subr.mxu0 0.0
    %241 = vmatpush2.msra.mxu0 0.0
    %242 = vmatprep.subr.mxu0 0.0
    %243 = vmatpush2.msra.mxu0 0.0
    %244 = vmatprep.subr.mxu0 0.0
    %245 = vmatpush2.msra.mxu0 0.0
    %246 = vmatprep.subr.mxu0 0.0
    %247 = vmatpush2.msra.mxu0 0.0
    %248 = vmatprep.subr.mxu0 0.0
    %249 = vmatpush2.msra.mxu0 0.0
    %250 = vmatprep.subr.mxu0 0.0
    %251 = vmatpush2.msra.mxu0 0.0
    %252 = vmatprep.subr.mxu0 0.0
    %253 = vmatpush2.msra.mxu0 0.0
    %254 = vmatprep.subr.mxu0 0.0
    %255 = vmatpush2.msra.mxu0 0.0
    %256 = vmatprep.subr.mxu0 0.0
    %257 = vmatpush2.msra.mxu0 0.0
    %258 = vmatprep.subr.mxu0 0.0
    %259 = vmatpush2.msra.mxu0 0.0
    %260 = vmatprep.mubr.f32.mxu0 0.0
    %261 = vmatmul.mubr.f32.gmra.mxu0 %v190
    %v262 = vpop.f32.mrf.mxu0
    %v263 = vadd.f32 %v187, %v262
    %v264 = vpop.f32.mrf.mxu0
    %265 = vdwg.mxu0
    %v266 = vld [vmem:[%s6] sm:$0x1f]
    %268 = vset.pattern.permute.xlu0 0
    %269 = vperm.xlu0 %268, %v266
    %v270 = vpop.permute.xlu0 %269
    %v272 = vadd.f32 %v263, %v270
    %v273 = vxor.u32 %v272, 2147483648
    %v274 = vmul.f32 %v273, 1.442695
    %v275 = vpow.pop %v274
    %v276 = vadd.f32 %v275, 1.0
    %v277 = vrcp.pop %v276
    %v278 = vmul.f32 1.0, %v277
    %v279 = vld [vmem:[%s7] sm:$0x1]
    %v280 = vld [vmem:[#allocation2] sm:$0x1]
    %282 = vset.pattern.permute.xlu0 0
    %283 = vperm.xlu0 %282, %v280
    %v284 = vpop.permute.xlu0 %283
    %v286 = vlaneseq
    %v287 = vshrl.u32 %v286, 7
    %v288 = vsub.s32 0, %v287
    %v289 = vrot.slane %v284, %v288
    %vm290 = vcmask 39936
    %v292 = vsel %vm290, %v279, 0
    %vm294 = vcmask 1044480
    %v296 = vsel %vm294, %v278, 0
    %298 = vmatprep.subr.mxu0 0.0
    %299 = vmatpush1.msra.mxu0 0.0
    %300 = vmatprep.subr.mxu0 0.0
    %301 = vmatpush1.msra.mxu0 0.0
    %302 = vmatprep.subr.mxu0 0.0
    %303 = vmatpush1.msra.mxu0 0.0
    %304 = vmatprep.subr.mxu0 0.0
    %305 = vmatpush1.msra.mxu0 0.0
    %306 = vmatprep.subr.mxu0 0.0
    %307 = vmatpush1.msra.mxu0 0.0
    %308 = vmatprep.subr.mxu0 0.0
    %309 = vmatpush1.msra.mxu0 0.0
    %310 = vmatprep.subr.mxu0 0.0
    %311 = vmatpush1.msra.mxu0 0.0
    %312 = vmatprep.subr.mxu0 0.0
    %313 = vmatpush1.msra.mxu0 0.0
    %314 = vmatprep.subr.mxu0 0.0
    %315 = vmatpush1.msra.mxu0 0.0
    %316 = vmatprep.subr.mxu0 0.0
    %317 = vmatpush1.msra.mxu0 0.0
    %318 = vmatprep.subr.mxu0 0.0
    %319 = vmatpush1.msra.mxu0 0.0
    %320 = vmatprep.subr.mxu0 0.0
    %321 = vmatpush1.msra.mxu0 0.0
    %322 = vmatprep.subr.mxu0 0.0
    %323 = vmatpush1.msra.mxu0 0.0
    %324 = vmatprep.subr.mxu0 0.0
    %325 = vmatpush1.msra.mxu0 0.0
    %326 = vmatprep.subr.mxu0 0.0
    %327 = vmatpush1.msra.mxu0 0.0
    %328 = vmatprep.subr.mxu0 0.0
    %329 = vmatpush1.msra.mxu0 %v296
    %330 = vmatprep.subr.mxu0 0.0
    %331 = vmatpush2.msra.mxu0 0.0
    %332 = vmatprep.subr.mxu0 0.0
    %333 = vmatpush2.msra.mxu0 0.0
    %334 = vmatprep.subr.mxu0 0.0
    %335 = vmatpush2.msra.mxu0 0.0
    %336 = vmatprep.subr.mxu0 0.0
    %337 = vmatpush2.msra.mxu0 0.0
    %338 = vmatprep.subr.mxu0 0.0
    %339 = vmatpush2.msra.mxu0 0.0
    %340 = vmatprep.subr.mxu0 0.0
    %341 = vmatpush2.msra.mxu0 0.0
    %342 = vmatprep.subr.mxu0 0.0
    %343 = vmatpush2.msra.mxu0 0.0
    %344 = vmatprep.subr.mxu0 0.0
    %345 = vmatpush2.msra.mxu0 0.0
    %346 = vmatprep.subr.mxu0 0.0
    %347 = vmatpush2.msra.mxu0 0.0
    %348 = vmatprep.subr.mxu0 0.0
    %349 = vmatpush2.msra.mxu0 0.0
    %350 = vmatprep.subr.mxu0 0.0
    %351 = vmatpush2.msra.mxu0 0.0
    %352 = vmatprep.subr.mxu0 0.0
    %353 = vmatpush2.msra.mxu0 0.0
    %354 = vmatprep.subr.mxu0 0.0
    %355 = vmatpush2.msra.mxu0 0.0
    %356 = vmatprep.subr.mxu0 0.0
    %357 = vmatpush2.msra.mxu0 0.0
    %358 = vmatprep.subr.mxu0 0.0
    %359 = vmatpush2.msra.mxu0 0.0
    %360 = vmatprep.subr.mxu0 0.0
    %361 = vmatpush2.msra.mxu0 0.0
    %362 = vmatprep.mubr.f32.mxu0 0.0
    %363 = vmatmul.mubr.f32.gmra.mxu0 %v292
    %v364 = vpop.f32.mrf.mxu0
    %v365 = vadd.f32 %v289, %v364
    %v366 = vpop.f32.mrf.mxu0
    %367 = vdwg.mxu0
    %368 = vst [vmem:[#allocation8] sm:$0x1] %v365
    // Predicated region
    $region46: #{tpu_custom_call.1} parent=1 // pred_check
      _
    $region47: #{tpu_custom_call.1} parent=1 // pred_check_branch
      %370 = sbr.rel (0) target = $region49
    $region48: #{tpu_custom_call.1} parent=1 // pred_region
      %s372 = ssub.s32 16, 16
      %373 = vsyncadd [#allocation5], %s372
      %s375 = sshll.u32 [#allocation8], 4
      %s376 = int_to_ptr.vmem [resolvable:$true] %s375
      %378 = dma.vmem_to_hbm [thread:$0]  %s376, 16, %s9, [#allocation5]
    $region49: #{tpu_custom_call.1} parent=1 // pred_fallthru
      _
    // Predicated region
    $region50: #{tpu_custom_call.1} parent=1 // pred_check
      _
    $region51: #{tpu_custom_call.1} parent=1 // pred_check_branch
      %380 = sbr.rel (0) target = $region53
    $region52: #{tpu_custom_call.1} parent=1 // pred_region
      %381 = dma.done [#allocation5], 16
    $region53: #{tpu_custom_call.1} parent=1 // pred_fallthru
      _
    %382 = vsyncpa [#allocation4], 1
    %383 = vsyncpa [#allocation7], 1
    %384 = vsyncpa [#allocation5], 1

</llo_original>
